<compile_context>
chip_gen: v7x
topology: tpu7x:2x2x1
jax: 0.10.0
libtpu: 0.0.40
codegen_flags: <defaults>
</compile_context>

<pallas_src>
import functools

import jax
import jax.numpy as jnp
from jax.experimental import pallas as pl
from jax.experimental.pallas import tpu as pltpu

_LANE = 128


def _round_up(x, m):
    return ((x + m - 1) // m) * m


def _pick_tile(n_pad, candidates):
    for c in candidates:
        if c <= n_pad and n_pad % c == 0:
            return c
    return n_pad


# --------------------------------------------------------------------------
# Aggregation kernel:  Y = A_pad @ H_pad (+ bias) (+ ReLU)
# grid = (n_pad // TM, n_pad // TK); accumulator lives in VMEM scratch.
# --------------------------------------------------------------------------
def _agg_kernel(*refs, has_bias: bool, apply_relu: bool):
    if has_bias:
        a_ref, h_ref, b_ref, o_ref, acc_ref = refs
    else:
        a_ref, h_ref, o_ref, acc_ref = refs

    k = pl.program_id(1)

    @pl.when(k == 0)
    def _():
        acc_ref[...] = jnp.zeros_like(acc_ref)

    acc_ref[...] += jnp.dot(
        a_ref[...], h_ref[...], preferred_element_type=jnp.float32
    )

    @pl.when(k == pl.num_programs(1) - 1)
    def _():
        y = acc_ref[...]
        if has_bias:
            y = y + b_ref[...]
        if apply_relu:
            y = jnp.maximum(y, 0.0)
        o_ref[...] = y.astype(o_ref.dtype)


def aggregate(a_pad, h_pad, bias=None, *, apply_relu=False, out_dtype=jnp.float32):
    """Tiled Y = A_pad @ H_pad (+ bias) (+ relu).  A_pad: (Np, Np), H_pad: (Np, F)."""
    n_pad = a_pad.shape[0]
    f_pad = h_pad.shape[1]

    tm = _pick_tile(n_pad, (512, 256, 128))
    tk = _pick_tile(n_pad, (1024, 512, 256, 128))
    grid = (n_pad // tm, n_pad // tk)

    a_bf = a_pad.astype(jnp.bfloat16)
    h_bf = h_pad.astype(jnp.bfloat16)

    in_specs = [
        pl.BlockSpec((tm, tk), lambda i, k: (i, k)),        # A row/col tile
        pl.BlockSpec((tk, f_pad), lambda i, k: (k, 0)),     # H column-block of nodes
    ]
    args = [a_bf, h_bf]
    has_bias = bias is not None
    if has_bias:
        in_specs.append(pl.BlockSpec((1, f_pad), lambda i, k: (0, 0)))
        args.append(bias.astype(jnp.float32))

    kernel = functools.partial(_agg_kernel, has_bias=has_bias, apply_relu=apply_relu)

    # VMEM budget: double-buffered bf16 A & H tiles, double-buffered f32 output
    # tile, f32 accumulator, bias.  Keep the scoped limit comfortably under
    # v7x's 64 MiB physical VMEM.
    vmem_need = (
        2 * (tm * tk * 2 + tk * f_pad * 2 + tm * f_pad * 4)
        + tm * f_pad * 4
        + f_pad * 4
    )
    vmem_limit = int(min(max(4 * vmem_need, 16 * 1024 * 1024), 48 * 1024 * 1024))

    cost = pl.CostEstimate(
        flops=2 * n_pad * n_pad * f_pad,
        transcendentals=0,
        bytes_accessed=n_pad * n_pad * 2 + n_pad * f_pad * 2 + n_pad * f_pad * 4,
    )

    return pl.pallas_call(
        kernel,
        out_shape=jax.ShapeDtypeStruct((n_pad, f_pad), out_dtype),
        grid_spec=pltpu.PrefetchScalarGridSpec(
            num_scalar_prefetch=0,
            grid=grid,
            in_specs=in_specs,
            out_specs=pl.BlockSpec((tm, f_pad), lambda i, k: (i, 0)),
            scratch_shapes=[pltpu.VMEM((tm, f_pad), jnp.float32)],
        ),
        compiler_params=pltpu.CompilerParams(
            dimension_semantics=("parallel", "arbitrary"),
            vmem_limit_bytes=vmem_limit,
        ),
        cost_estimate=cost,
    )(*args)


# --------------------------------------------------------------------------
# Feature-transform kernel:  Y = X @ W (+ bias) (+ ReLU)
# grid = (n_pad // TM,); feature dims are small (<=128-padded) so K is one block.
# --------------------------------------------------------------------------
def _transform_kernel(*refs, has_bias: bool, apply_relu: bool):
    if has_bias:
        x_ref, w_ref, b_ref, o_ref = refs
    else:
        x_ref, w_ref, o_ref = refs

    y = jnp.dot(x_ref[...], w_ref[...], preferred_element_type=jnp.float32)
    if has_bias:
        y = y + b_ref[...]
    if apply_relu:
        y = jnp.maximum(y, 0.0)
    o_ref[...] = y.astype(o_ref.dtype)


def feature_transform(x_pad, w_pad, bias=None, *, apply_relu=False,
                      out_dtype=jnp.float32):
    """Tiled Y = X_pad @ W_pad (+ bias) (+ relu).  X_pad: (Np, Fin), W_pad: (Fin, Fout)."""
    n_pad, in_pad = x_pad.shape
    out_pad = w_pad.shape[1]

    tm = _pick_tile(n_pad, (512, 256, 128))
    grid = (n_pad // tm,)

    x_bf = x_pad.astype(jnp.bfloat16)
    w_bf = w_pad.astype(jnp.bfloat16)

    in_specs = [
        pl.BlockSpec((tm, in_pad), lambda i: (i, 0)),
        pl.BlockSpec((in_pad, out_pad), lambda i: (0, 0)),
    ]
    args = [x_bf, w_bf]
    has_bias = bias is not None
    if has_bias:
        in_specs.append(pl.BlockSpec((1, out_pad), lambda i: (0, 0)))
        args.append(bias.astype(jnp.float32))

    kernel = functools.partial(_transform_kernel, has_bias=has_bias,
                               apply_relu=apply_relu)

    cost = pl.CostEstimate(
        flops=2 * n_pad * in_pad * out_pad,
        transcendentals=0,
        bytes_accessed=n_pad * in_pad * 2 + in_pad * out_pad * 2
        + n_pad * out_pad * 4,
    )

    return pl.pallas_call(
        kernel,
        out_shape=jax.ShapeDtypeStruct((n_pad, out_pad), out_dtype),
        grid_spec=pltpu.PrefetchScalarGridSpec(
            num_scalar_prefetch=0,
            grid=grid,
            in_specs=in_specs,
            out_specs=pl.BlockSpec((tm, out_pad), lambda i: (i, 0)),
        ),
        compiler_params=pltpu.CompilerParams(
            dimension_semantics=("parallel",),
            vmem_limit_bytes=32 * 1024 * 1024,
        ),
        cost_estimate=cost,
    )(*args)


# --------------------------------------------------------------------------
# One GraphConv layer (DGL semantics), association chosen by feature widths.
# --------------------------------------------------------------------------
def gcn_layer(a_pad, h_pad, w_pad, b_pad, *, apply_relu):
    in_pad, out_pad = w_pad.shape
    if out_pad <= in_pad:
        # A @ (X @ W): shrink features first, aggregate on the narrower dim.
        xw = feature_transform(h_pad, w_pad)
        return aggregate(a_pad, xw, bias=b_pad, apply_relu=apply_relu)
    else:
        # (A @ X) @ W: aggregate on the narrower input dim, then widen.
        ax = aggregate(a_pad, h_pad)
        return feature_transform(ax, w_pad, bias=b_pad, apply_relu=apply_relu)


class GCNlayerPallas:
    """JAX/Pallas reimplementation of the PyTorch GCNlayer module.

    layers: GraphConv(in_feats -> n_hidden), (n_layers - 1) x GraphConv(n_hidden -> n_hidden),
            GraphConv(n_hidden -> n_classes).
    ReLU after layer i for i != n_layers (i.e. every layer except the last).
    Parameters are stored zero-padded to 128-lane multiples; outputs are sliced back.
    """

    def __init__(self, in_feats, n_hidden, n_classes, n_layers, key):
        self.n_layers = n_layers
        self.n_classes = n_classes
        dims = [in_feats] + [n_hidden] * n_layers + [n_classes]
        self.params = []
        for li in range(len(dims) - 1):
            key, wk = jax.random.split(key)
            fan_in, fan_out = dims[li], dims[li + 1]
            # Glorot-uniform (DGL GraphConv default), deterministic via PRNGKey.
            limit = (6.0 / (fan_in + fan_out)) ** 0.5
            w = jax.random.uniform(
                wk, (fan_in, fan_out), jnp.float32, -limit, limit
            )
            in_pad = _round_up(fan_in, _LANE)
            out_pad = _round_up(fan_out, _LANE)
            w_pad = jnp.zeros((in_pad, out_pad), jnp.float32)
            w_pad = w_pad.at[:fan_in, :fan_out].set(w)
            b_pad = jnp.zeros((1, out_pad), jnp.float32)  # bias init = 0 (DGL default)
            self.params.append((w_pad, b_pad))

    def __call__(self, a_norm, features):
        n, in_feats = features.shape
        n_pad = _round_up(n, _LANE)
        in_pad = _round_up(in_feats, _LANE)

        # Zero-pad graph and features once; zero pad rows/cols cannot contaminate
        # valid rows because A_pad has zero columns at pad positions.
        a_pad = jnp.zeros((n_pad, n_pad), jnp.float32).at[:n, :n].set(a_norm)
        a_pad = a_pad.astype(jnp.bfloat16)
        h = jnp.zeros((n_pad, in_pad), jnp.float32).at[:n, :in_feats].set(features)

        for i, (w_pad, b_pad) in enumerate(self.params):
            apply_relu = i != self.n_layers  # last layer index == n_layers
            h = gcn_layer(a_pad, h, w_pad, b_pad, apply_relu=apply_relu)

        return h[:n, :self.n_classes]


def build_normalized_adjacency(key, n_nodes, edge_prob=0.3):
    """Dense D^{-1/2} (A + I) D^{-1/2} for a random undirected graph."""
    upper = jax.random.bernoulli(key, edge_prob, (n_nodes, n_nodes)).astype(jnp.float32)
    upper = jnp.triu(upper, k=1)
    adj = upper + upper.T + jnp.eye(n_nodes, dtype=jnp.float32)  # self-loops
    deg = adj.sum(axis=1)
    d_inv_sqrt = 1.0 / jnp.sqrt(deg)
    return adj * d_inv_sqrt[:, None] * d_inv_sqrt[None, :]


def _reference_forward(model, a_norm, features):
    """Pure-JAX reference (f32) with the same padded parameters."""
    n, in_feats = features.shape
    h = features
    for i, (w_pad, b_pad) in enumerate(model.params):
        fan_in = h.shape[1]
        w = w_pad[:fan_in]
        h = a_norm @ (h @ w) + b_pad[0][None, :]
        if i != model.n_layers:
            h = jnp.maximum(h, 0.0)
    return h[:, :model.n_classes]


if __name__ == "__main__":
    key = jax.random.PRNGKey(0)
    k_graph, k_feat, k_param = jax.random.split(key, 3)

    n_nodes = 32
    in_feats = 16
    n_hidden = 32
    n_classes = 8
    n_layers = 2  # -> 3 GraphConv layers total

    a_norm = build_normalized_adjacency(k_graph, n_nodes)
    features = jax.random.normal(k_feat, (n_nodes, in_feats), jnp.float32)

    model = GCNlayerPallas(in_feats, n_hidden, n_classes, n_layers, k_param)
    out = jax.block_until_ready(model(a_norm, features))

    assert out.shape == (n_nodes, n_classes), out.shape

    # Loose tolerance: MXU inputs are bf16 (f32 accumulation).
    ref = _reference_forward(model, a_norm, features)
    assert jnp.allclose(out, ref, atol=1e-1, rtol=1e-1), (
        float(jnp.max(jnp.abs(out - ref)))
    )

    print("KERNEL_OK")
</pallas_src>

<mosaic_0001>
module attributes {stable_mosaic.version = 11 : i64} {
  func.func @_transform_kernel(%arg0: i32, %arg1: memref<128x128xbf16, #tpu.memory_space<vmem>>, %arg2: memref<128x128xbf16, #tpu.memory_space<vmem>>, %arg3: memref<128x128xf32, #tpu.memory_space<vmem>>) attributes {dimension_semantics = [#tpu.dimension_semantics<parallel>], iteration_bounds = array<i64: 1>, scalar_prefetch = 0 : i64, scratch_operands = 0 : i64, tpu.core_type = #tpu.core_type<tc>, window_params = [{transform_indices = @transform_0, window_bounds = array<i64: 128, 128>}, {pipeline_mode = #tpu.pipeline_mode<synchronous>, transform_indices = @transform_1, window_bounds = array<i64: 128, 128>}, {transform_indices = @transform_2, window_bounds = array<i64: 128, 128>}]} {
    %c0 = arith.constant 0 : index
    %c0_0 = arith.constant 0 : index
    %0 = vector.load %arg1[%c0, %c0_0] : memref<128x128xbf16, #tpu.memory_space<vmem>>, vector<128x128xbf16>
    %c0_1 = arith.constant 0 : index
    %c0_2 = arith.constant 0 : index
    %1 = vector.load %arg2[%c0_1, %c0_2] : memref<128x128xbf16, #tpu.memory_space<vmem>>, vector<128x128xbf16>
    %cst = arith.constant dense<0.000000e+00> : vector<128x128xf32>
    %2 = tpu.matmul %0, %1, %cst {dimension_numbers = #tpu.dot_dimension_numbers<[1], [0], [0], [1], [0, 0, 1, 1], [], []>} : vector<128x128xbf16>, vector<128x128xbf16>, vector<128x128xf32> -> vector<128x128xf32>
    %c0_3 = arith.constant 0 : index
    %c0_4 = arith.constant 0 : index
    %3 = vector.load %arg3[%c0_3, %c0_4] : memref<128x128xf32, #tpu.memory_space<vmem>>, vector<128x128xf32>
    tpu.vector_store %arg3[%c0_3, %c0_4], %2 {strides = array<i32>} : memref<128x128xf32, #tpu.memory_space<vmem>>, vector<128x128xf32>,
    return
  }
  func.func @transform_0(%arg0: i32) -> (i32, i32) {
    %c0_i32 = arith.constant 0 : i32
    %c0_i32_0 = arith.constant 0 : i32
    return %arg0, %c0_i32 : i32, i32
  }
  func.func @transform_1(%arg0: i32) -> (i32, i32) {
    %c0_i32 = arith.constant 0 : i32
    %c0_i32_0 = arith.constant 0 : i32
    %c0_i32_1 = arith.constant 0 : i32
    return %c0_i32, %c0_i32_0 : i32, i32
  }
  func.func @transform_2(%arg0: i32) -> (i32, i32) {
    %c0_i32 = arith.constant 0 : i32
    %c0_i32_0 = arith.constant 0 : i32
    return %arg0, %c0_i32 : i32, i32
  }
}

</mosaic_0001>

<llo_original>
// kernel: tpu_custom_call.1
$region0: #{tpu_custom_call.1}
  #allocation0 [shape = 'u32[]', space=smem, size = 0x4, offset = 0x4, fixed_abs, tag = 'smem constant byte address 0x4 - core index']
  #allocation1 [shape = 'u32[144,128]{1,0:T(1,128)}', space=vmem, size = 0x12000, scoped, tag = 'internal scratch']
  %s0 = inlined_call_operand.hbm [shape: bf16[128,128], index: 0, kind: input, shape index: {}]
  %s1 = inlined_call_operand.hbm [shape: bf16[128,128], index: 1, kind: input, shape index: {}]
  %s2 = inlined_call_operand.hbm [shape: f32[128,128], index: 2, kind: output, shape index: {}]
  %s3 = sld [smem:[#allocation0]]
  $region26: #{tpu_custom_call.1} parent=0
    _
  %s5 = ssub.s32 1, %s3
  %s6 = scalar_select 0, %s5, %s3
  $region1: #{tpu_custom_call.1} parent=0
    #allocation2 [shape = 'u8[32768]{0}', space=vmem, size = 0x8000, scoped, tag = 'input window, operand 0, single buffered']
    #allocation3 [shape = 's32[1]{0}', space=sflag, size = 0x4, scoped, tag = 'scoped memory for tpu_custom_call.1']
    #allocation4 [shape = 's32[1]{0}', space=sflag, size = 0x4, scoped, tag = 'scoped memory for tpu_custom_call.1']
    #allocation5 [shape = 'u8[32768]{0}', space=vmem, size = 0x8000, scoped, tag = 'input window, operand 1, single buffered']
    #allocation6 [shape = 's32[1]{0}', space=sflag, size = 0x4, scoped, tag = 'scoped memory for tpu_custom_call.1']
    #allocation7 [shape = 'u8[65536]{0}', space=vmem, size = 0x10000, scoped, tag = 'output window, operand 0, single buffered']
    %7 = vsyncpa [#allocation3], 0
    %8 = vsyncpa [#allocation6], 0
    %9 = vsyncpa [#allocation4], 0
    // Predicated region
    $region2: #{tpu_custom_call.1} parent=1 // pred_check
      _
    $region3: #{tpu_custom_call.1} parent=1 // pred_check_branch
      %11 = sbr.rel (0) target = $region5
    $region4: #{tpu_custom_call.1} parent=1 // pred_region
      %s13 = ssub.s32 1024, 1024
      %14 = vsyncadd [#allocation3], %s13
      %s15 = sshll.u32 [#allocation2], 4
      %s16 = int_to_ptr.vmem [resolvable:$true] %s15
      %21 = dma.hbm_to_vmem [thread:$0]  %s0, 1024, %s16, [#allocation3], 64, 64, 4
    $region5: #{tpu_custom_call.1} parent=1 // pred_fallthru
      _
    // Predicated region
    $region6: #{tpu_custom_call.1} parent=1 // pred_check
      _
    $region7: #{tpu_custom_call.1} parent=1 // pred_check_branch
      %23 = sbr.rel (0) target = $region9
    $region8: #{tpu_custom_call.1} parent=1 // pred_region
      %s25 = ssub.s32 1024, 1024
      %26 = vsyncadd [#allocation6], %s25
      %s27 = sshll.u32 [#allocation5], 4
      %s28 = int_to_ptr.vmem [resolvable:$true] %s27
      %33 = dma.hbm_to_vmem [thread:$0]  %s1, 1024, %s28, [#allocation6], 64, 64, 4
    $region9: #{tpu_custom_call.1} parent=1 // pred_fallthru
      _
    // Predicated region
    $region10: #{tpu_custom_call.1} parent=1 // pred_check
      _
    $region11: #{tpu_custom_call.1} parent=1 // pred_check_branch
      %35 = sbr.rel (0) target = $region13
    $region12: #{tpu_custom_call.1} parent=1 // pred_region
      %36 = dma.done [#allocation3], 1024
    $region13: #{tpu_custom_call.1} parent=1 // pred_fallthru
      _
    // Predicated region
    $region14: #{tpu_custom_call.1} parent=1 // pred_check
      _
    $region15: #{tpu_custom_call.1} parent=1 // pred_check_branch
      %38 = sbr.rel (0) target = $region17
    $region16: #{tpu_custom_call.1} parent=1 // pred_region
      %39 = dma.done [#allocation6], 1024
    $region17: #{tpu_custom_call.1} parent=1 // pred_fallthru
      _
    %v41 = vld [vmem:[#allocation2] sm:$0xf]
    %v42 = vld [vmem:[#allocation2 + $0x4] sm:$0xf]
    %v43 = vld [vmem:[#allocation2 + $0x8] sm:$0xf]
    %v44 = vld [vmem:[#allocation2 + $0xc] sm:$0xf]
    %v45 = vld [vmem:[#allocation2 + $0x10] sm:$0xf]
    %v46 = vld [vmem:[#allocation2 + $0x14] sm:$0xf]
    %v47 = vld [vmem:[#allocation2 + $0x18] sm:$0xf]
    %v48 = vld [vmem:[#allocation2 + $0x1c] sm:$0xf]
    %v49 = vld [vmem:[#allocation2 + $0x20] sm:$0xf]
    %v50 = vld [vmem:[#allocation2 + $0x24] sm:$0xf]
    %v51 = vld [vmem:[#allocation2 + $0x28] sm:$0xf]
    %v52 = vld [vmem:[#allocation2 + $0x2c] sm:$0xf]
    %v53 = vld [vmem:[#allocation2 + $0x30] sm:$0xf]
    %v54 = vld [vmem:[#allocation2 + $0x34] sm:$0xf]
    %v55 = vld [vmem:[#allocation2 + $0x38] sm:$0xf]
    %v56 = vld [vmem:[#allocation2 + $0x3c] sm:$0xf]
    %v57 = vld [vmem:[#allocation5] sm:$0xf]
    %v58 = vld [vmem:[#allocation5 + $0x4] sm:$0xf]
    %v59 = vld [vmem:[#allocation5 + $0x8] sm:$0xf]
    %v60 = vld [vmem:[#allocation5 + $0xc] sm:$0xf]
    %v61 = vld [vmem:[#allocation5 + $0x10] sm:$0xf]
    %v62 = vld [vmem:[#allocation5 + $0x14] sm:$0xf]
    %v63 = vld [vmem:[#allocation5 + $0x18] sm:$0xf]
    %v64 = vld [vmem:[#allocation5 + $0x1c] sm:$0xf]
    %v65 = vld [vmem:[#allocation5 + $0x20] sm:$0xf]
    %v66 = vld [vmem:[#allocation5 + $0x24] sm:$0xf]
    %v67 = vld [vmem:[#allocation5 + $0x28] sm:$0xf]
    %v68 = vld [vmem:[#allocation5 + $0x2c] sm:$0xf]
    %v69 = vld [vmem:[#allocation5 + $0x30] sm:$0xf]
    %v70 = vld [vmem:[#allocation5 + $0x34] sm:$0xf]
    %v71 = vld [vmem:[#allocation5 + $0x38] sm:$0xf]
    %v72 = vld [vmem:[#allocation5 + $0x3c] sm:$0xf]
    %v89 = vunpack.c.l.b16 %v41
    %v90 = vunpack.c.l.b16 %v42
    %v91 = vunpack.c.l.b16 %v43
    %v92 = vunpack.c.l.b16 %v44
    %v93 = vunpack.c.l.b16 %v45
    %v94 = vunpack.c.l.b16 %v46
    %v95 = vunpack.c.l.b16 %v47
    %v96 = vunpack.c.l.b16 %v48
    %v97 = vunpack.c.l.b16 %v49
    %v98 = vunpack.c.l.b16 %v50
    %v99 = vunpack.c.l.b16 %v51
    %v100 = vunpack.c.l.b16 %v52
    %v101 = vunpack.c.l.b16 %v53
    %v102 = vunpack.c.l.b16 %v54
    %v103 = vunpack.c.l.b16 %v55
    %v104 = vunpack.c.l.b16 %v56
    %v105 = vpack.c.b16 %v90, %v89
    %v106 = vpack.c.b16 %v92, %v91
    %v107 = vpack.c.b16 %v94, %v93
    %v108 = vpack.c.b16 %v96, %v95
    %v109 = vpack.c.b16 %v98, %v97
    %v110 = vpack.c.b16 %v100, %v99
    %v111 = vpack.c.b16 %v102, %v101
    %v112 = vpack.c.b16 %v104, %v103
    %v137 = vunpack.c.l.b16 %v57
    %v138 = vunpack.c.l.b16 %v58
    %v139 = vunpack.c.l.b16 %v59
    %v140 = vunpack.c.l.b16 %v60
    %v141 = vunpack.c.l.b16 %v61
    %v142 = vunpack.c.l.b16 %v62
    %v143 = vunpack.c.l.b16 %v63
    %v144 = vunpack.c.l.b16 %v64
    %v145 = vunpack.c.l.b16 %v65
    %v146 = vunpack.c.l.b16 %v66
    %v147 = vunpack.c.l.b16 %v67
    %v148 = vunpack.c.l.b16 %v68
    %v149 = vunpack.c.l.b16 %v69
    %v150 = vunpack.c.l.b16 %v70
    %v151 = vunpack.c.l.b16 %v71
    %v152 = vunpack.c.l.b16 %v72
    %v153 = vpack.c.b16 %v138, %v137
    %v154 = vpack.c.b16 %v140, %v139
    %v155 = vpack.c.b16 %v142, %v141
    %v156 = vpack.c.b16 %v144, %v143
    %v157 = vpack.c.b16 %v146, %v145
    %v158 = vpack.c.b16 %v148, %v147
    %v159 = vpack.c.b16 %v150, %v149
    %v160 = vpack.c.b16 %v152, %v151
    %169 = vmatprep.subr.bf16.mxu0 0
    %170 = vmatpush1.bf16.msra.mxu0 %v153
    %171 = vmatprep.subr.bf16.mxu0 0
    %172 = vmatpush1.bf16.msra.mxu0 %v154
    %173 = vmatprep.subr.bf16.mxu0 0
    %174 = vmatpush1.bf16.msra.mxu0 %v155
    %175 = vmatprep.subr.bf16.mxu0 0
    %176 = vmatpush1.bf16.msra.mxu0 %v156
    %177 = vmatprep.subr.bf16.mxu0 0
    %178 = vmatpush1.bf16.msra.mxu0 %v157
    %179 = vmatprep.subr.bf16.mxu0 0
    %180 = vmatpush1.bf16.msra.mxu0 %v158
    %181 = vmatprep.subr.bf16.mxu0 0
    %182 = vmatpush1.bf16.msra.mxu0 %v159
    %183 = vmatprep.subr.bf16.mxu0 0
    %184 = vmatpush1.bf16.msra.mxu0 %v160
    %185 = vmatprep.subr.bf16.mxu0 0
    %186 = vmatpush1.bf16.msra.mxu0 0
    %187 = vmatprep.subr.bf16.mxu0 0
    %188 = vmatpush1.bf16.msra.mxu0 0
    %189 = vmatprep.subr.bf16.mxu0 0
    %190 = vmatpush1.bf16.msra.mxu0 0
    %191 = vmatprep.subr.bf16.mxu0 0
    %192 = vmatpush1.bf16.msra.mxu0 0
    %193 = vmatprep.subr.bf16.mxu0 0
    %194 = vmatpush1.bf16.msra.mxu0 0
    %195 = vmatprep.subr.bf16.mxu0 0
    %196 = vmatpush1.bf16.msra.mxu0 0
    %197 = vmatprep.subr.bf16.mxu0 0
    %198 = vmatpush1.bf16.msra.mxu0 0
    %199 = vmatprep.subr.bf16.mxu0 0
    %200 = vmatpush1.bf16.msra.mxu0 0
    %201 = vmatprep.mubr.bf16.mxu0 0
    %202 = vmatmul.mubr.bf16.gmra.mrb[0].mxu0 %v105
    %v203 = vpop.f32.mrb[0].mxu0
    %v204 = vadd.f32 0.0, %v203
    %v205 = vpop.f32.mrb[0].mxu0
    %v206 = vpop.f32.mrb[0].mxu0
    %v207 = vadd.f32 0.0, %v206
    %v208 = vpop.f32.mrb[0].mxu0
    %209 = vmatprep.mubr.bf16.mxu0 0
    %210 = vmatmul.mubr.bf16.gmra.mrb[0].mxu0 %v106
    %v211 = vpop.f32.mrb[0].mxu0
    %v212 = vadd.f32 0.0, %v211
    %v213 = vpop.f32.mrb[0].mxu0
    %v214 = vpop.f32.mrb[0].mxu0
    %v215 = vadd.f32 0.0, %v214
    %v216 = vpop.f32.mrb[0].mxu0
    %217 = vmatprep.mubr.bf16.mxu0 0
    %218 = vmatmul.mubr.bf16.gmra.mrb[0].mxu0 %v107
    %v219 = vpop.f32.mrb[0].mxu0
    %v220 = vadd.f32 0.0, %v219
    %v221 = vpop.f32.mrb[0].mxu0
    %v222 = vpop.f32.mrb[0].mxu0
    %v223 = vadd.f32 0.0, %v222
    %v224 = vpop.f32.mrb[0].mxu0
    %225 = vmatprep.mubr.bf16.mxu0 0
    %226 = vmatmul.mubr.bf16.gmra.mrb[0].mxu0 %v108
    %v227 = vpop.f32.mrb[0].mxu0
    %v228 = vadd.f32 0.0, %v227
    %v229 = vpop.f32.mrb[0].mxu0
    %v230 = vpop.f32.mrb[0].mxu0
    %v231 = vadd.f32 0.0, %v230
    %v232 = vpop.f32.mrb[0].mxu0
    %233 = vmatprep.mubr.bf16.mxu0 0
    %234 = vmatmul.mubr.bf16.gmra.mrb[0].mxu0 %v109
    %v235 = vpop.f32.mrb[0].mxu0
    %v236 = vadd.f32 0.0, %v235
    %v237 = vpop.f32.mrb[0].mxu0
    %v238 = vpop.f32.mrb[0].mxu0
    %v239 = vadd.f32 0.0, %v238
    %v240 = vpop.f32.mrb[0].mxu0
    %241 = vmatprep.mubr.bf16.mxu0 0
    %242 = vmatmul.mubr.bf16.gmra.mrb[0].mxu0 %v110
    %v243 = vpop.f32.mrb[0].mxu0
    %v244 = vadd.f32 0.0, %v243
    %v245 = vpop.f32.mrb[0].mxu0
    %v246 = vpop.f32.mrb[0].mxu0
    %v247 = vadd.f32 0.0, %v246
    %v248 = vpop.f32.mrb[0].mxu0
    %249 = vmatprep.mubr.bf16.mxu0 0
    %250 = vmatmul.mubr.bf16.gmra.mrb[0].mxu0 %v111
    %v251 = vpop.f32.mrb[0].mxu0
    %v252 = vadd.f32 0.0, %v251
    %v253 = vpop.f32.mrb[0].mxu0
    %v254 = vpop.f32.mrb[0].mxu0
    %v255 = vadd.f32 0.0, %v254
    %v256 = vpop.f32.mrb[0].mxu0
    %257 = vmatprep.mubr.bf16.mxu0 0
    %258 = vmatmul.mubr.bf16.gmra.mrb[0].mxu0 %v112
    %v259 = vpop.f32.mrb[0].mxu0
    %v260 = vadd.f32 0.0, %v259
    %v261 = vpop.f32.mrb[0].mxu0
    %v262 = vpop.f32.mrb[0].mxu0
    %v263 = vadd.f32 0.0, %v262
    %v264 = vpop.f32.mrb[0].mxu0
    %265 = vdwg.mxu0
    %266 = vst [vmem:[#allocation7] sm:$0xff] %v204
    %267 = vst [vmem:[#allocation7 + $0x8] sm:$0xff] %v207
    %268 = vst [vmem:[#allocation7 + $0x10] sm:$0xff] %v212
    %269 = vst [vmem:[#allocation7 + $0x18] sm:$0xff] %v215
    %270 = vst [vmem:[#allocation7 + $0x20] sm:$0xff] %v220
    %271 = vst [vmem:[#allocation7 + $0x28] sm:$0xff] %v223
    %272 = vst [vmem:[#allocation7 + $0x30] sm:$0xff] %v228
    %273 = vst [vmem:[#allocation7 + $0x38] sm:$0xff] %v231
    %274 = vst [vmem:[#allocation7 + $0x40] sm:$0xff] %v236
    %275 = vst [vmem:[#allocation7 + $0x48] sm:$0xff] %v239
    %276 = vst [vmem:[#allocation7 + $0x50] sm:$0xff] %v244
    %277 = vst [vmem:[#allocation7 + $0x58] sm:$0xff] %v247
    %278 = vst [vmem:[#allocation7 + $0x60] sm:$0xff] %v252
    %279 = vst [vmem:[#allocation7 + $0x68] sm:$0xff] %v255
    %280 = vst [vmem:[#allocation7 + $0x70] sm:$0xff] %v260
    %281 = vst [vmem:[#allocation7 + $0x78] sm:$0xff] %v263
    // Predicated region
    $region18: #{tpu_custom_call.1} parent=1 // pred_check
      _
    $region19: #{tpu_custom_call.1} parent=1 // pred_check_branch
      %283 = sbr.rel (0) target = $region21
    $region20: #{tpu_custom_call.1} parent=1 // pred_region
      %s285 = ssub.s32 2048, 2048
      %286 = vsyncadd [#allocation4], %s285
      %s287 = sshll.u32 [#allocation7], 4
      %s288 = int_to_ptr.vmem [resolvable:$true] %s287
      %293 = dma.vmem_to_hbm [thread:$0]  %s288, 2048, %s2, [#allocation4], 128, 128, 8
    $region21: #{tpu_custom_call.1} parent=1 // pred_fallthru
      _
    // Predicated region
    $region22: #{tpu_custom_call.1} parent=1 // pred_check
      _
    $region23: #{tpu_custom_call.1} parent=1 // pred_check_branch
      %295 = sbr.rel (0) target = $region25
    $region24: #{tpu_custom_call.1} parent=1 // pred_region
      %296 = dma.done [#allocation4], 2048
    $region25: #{tpu_custom_call.1} parent=1 // pred_fallthru
      _
    %297 = vsyncpa [#allocation3], 1
    %298 = vsyncpa [#allocation6], 1
    %299 = vsyncpa [#allocation4], 1

</llo_original>
